<compile_context>
chip_gen: v5e
topology: v5e:2x2
jax: 0.10.0
libtpu: 0.0.40
codegen_flags: <defaults>
</compile_context>

<pallas_src>
import functools

import jax
import jax.numpy as jnp
from jax.experimental import pallas as pl
from jax.experimental.pallas import tpu as pltpu


def _cdiv(a, b):
    return (a + b - 1) // b


def _round_up(a, b):
    return _cdiv(a, b) * b


def _vmem_limit_bytes():
    """Per-generation scoped-VMEM limit, leaving headroom below physical VMEM."""
    cap = 64 * 1024 * 1024  # conservative default = v7x per-core physical VMEM
    try:
        cap = int(pltpu.get_tpu_info().vmem_capacity_bytes)
    except Exception:
        pass
    # v7x (64 MiB) -> 48 MiB scoped; v5e/v6e (128 MiB) -> 96 MiB scoped.
    return min((cap * 3) // 4, 96 * 1024 * 1024)


# -----------------------------------------------------------------------------
# Kernels. x layout is NCHW flattened to (B, C, HW): C on sublanes, HW on lanes.
# -----------------------------------------------------------------------------

def _se_fused_kernel(x_ref, w_all_ref, wf_t_ref, o_ref, *, inv_hw):
    # x_ref/o_ref: (tb, C, HW) model dtype; weights f32, VMEM-resident.
    xt = x_ref[...]
    y = jnp.sum(xt.astype(jnp.float32), axis=2) * inv_hw            # mean (tb, C)
    hidden = jnp.maximum(
        jnp.dot(y, w_all_ref[...], preferred_element_type=jnp.float32), 0.0)
    s = jax.nn.sigmoid(
        jnp.dot(hidden, wf_t_ref[...], preferred_element_type=jnp.float32))
    o_ref[...] = xt * s.astype(xt.dtype)[:, :, None]                 # lane bcast


def _se_reduce_kernel(x_ref, w_all_ref, wf_t_ref, s_ref, acc_ref, *,
                      inv_hw, hw, thw, needs_mask):
    # x_ref: (tb, C, thw); s_ref: (tb, C, 1) f32 out; acc_ref: (tb, C) f32 scratch.
    h = pl.program_id(1)

    @pl.when(h == 0)
    def _():
        acc_ref[...] = jnp.zeros_like(acc_ref)

    xt = x_ref[...]
    if needs_mask:
        # Mask the ragged last spatial tile (OOB lanes hold unspecified data).
        lane = jax.lax.broadcasted_iota(jnp.int32, xt.shape, 2)
        xt = jnp.where(h * thw + lane < hw, xt, jnp.zeros_like(xt))
    acc_ref[...] += jnp.sum(xt.astype(jnp.float32), axis=2)

    @pl.when(h == pl.num_programs(1) - 1)
    def _():
        y = acc_ref[...] * inv_hw                                    # (tb, C)
        hidden = jnp.maximum(
            jnp.dot(y, w_all_ref[...], preferred_element_type=jnp.float32), 0.0)
        s = jax.nn.sigmoid(
            jnp.dot(hidden, wf_t_ref[...], preferred_element_type=jnp.float32))
        s_ref[...] = s[:, :, None]


def _se_apply_kernel(x_ref, s_ref, o_ref):
    # x_ref/o_ref: (tb, C, thw) model dtype; s_ref: (tb, C, 1) f32.
    xt = x_ref[...]
    o_ref[...] = xt * s_ref[...].astype(xt.dtype)


# -----------------------------------------------------------------------------
# Wrapper
# -----------------------------------------------------------------------------

@functools.partial(jax.jit,
                   static_argnames=("force_two_pass", "two_pass_spatial_tile"))
def se_layer_v2(x_nchw, w1, w2, w3, w4, wf, *,
                force_two_pass=False, two_pass_spatial_tile=None):
    """x_nchw: (B, C, H, W); wi: (C//r, C); wf: (C, 4*C//r). Returns (B, C, H, W)."""
    B, C, H, W = x_nchw.shape
    HW = H * W
    cr = w1.shape[0]
    ctot = 4 * cr
    dtype = x_nchw.dtype
    itemsize = jnp.dtype(dtype).itemsize

    x3 = x_nchw.reshape(B, C, HW)       # free view: C on sublanes, HW on lanes

    # Fuse the 4 parallel FCs into one matmul; pre-transpose weights (f32).
    w_all = jnp.concatenate([w1.T, w2.T, w3.T, w4.T], axis=1).astype(jnp.float32)
    wf_t = wf.T.astype(jnp.float32)                                  # (4*C//r, C)
    inv_hw = 1.0 / float(HW)

    vmem_limit = _vmem_limit_bytes()
    # Budget for streamed x blocks: total minus (double-buffered) weights,
    # scale/scratch and a pipeline margin.
    w_bytes = 2 * 2 * C * ctot * 4
    tile_budget = max(vmem_limit - w_bytes - (2 << 20), 4 << 20)
    # Per (batch-row x lane) VMEM cost: double-buffered in + out blocks in the
    # model dtype plus one f32 temp for the upcast reduce.
    per_lane = C * (4 * itemsize + 4)

    # ---- Batch tile: cap at 8 (scale tensor is (B, C, 1), so tb has no (8,128)
    # constraint); shrink only if a full-HW fused slab is too big.
    tb = min(B, 8)
    fused_ok = False
    if not force_two_pass:
        tb_f = tb
        while tb_f > 1 and tb_f * HW * per_lane > tile_budget:
            tb_f -= 1
        if tb_f * HW * per_lane <= tile_budget:
            tb = tb_f
            fused_ok = True

    if fused_ok:
        # ---- Single pass: reduce -> FC1..4 + ReLU + FC + sigmoid -> scale.
        n_b = _cdiv(B, tb)
        out3 = pl.pallas_call(
            functools.partial(_se_fused_kernel, inv_hw=inv_hw),
            out_shape=jax.ShapeDtypeStruct((B, C, HW), dtype),
            grid=(n_b,),
            in_specs=[
                pl.BlockSpec((tb, C, HW), lambda b: (b, 0, 0)),
                pl.BlockSpec((C, ctot), lambda b: (0, 0)),      # resident weights
                pl.BlockSpec((ctot, C), lambda b: (0, 0)),      # resident weights
            ],
            out_specs=pl.BlockSpec((tb, C, HW), lambda b: (b, 0, 0)),
            compiler_params=pltpu.CompilerParams(
                dimension_semantics=("parallel",),
                vmem_limit_bytes=vmem_limit),
            cost_estimate=pl.CostEstimate(
                flops=int(2 * B * C * HW + 4 * B * C * ctot),
                transcendentals=int(B * C),
                bytes_accessed=int(2 * B * C * HW * itemsize + 8 * C * ctot)),
        )(x3, w_all, wf_t)
        return out3.reshape(B, C, H, W)

    # ---- Streaming two-pass fallback: tile HW in multiples of 128 (lane-dense).
    max_thw = tile_budget // (tb * per_lane)
    while tb > 1 and max_thw < 128:
        tb = max(1, tb // 2)
        max_thw = tile_budget // (tb * per_lane)
    max_thw = max(128, (max_thw // 128) * 128)
    if two_pass_spatial_tile is not None:
        max_thw = max(128, min(max_thw, _round_up(int(two_pass_spatial_tile), 128)))
    if max_thw >= HW:
        thw, n_hw = HW, 1
    else:
        n_hw = _cdiv(HW, max_thw)
        thw = min(max_thw, _round_up(_cdiv(HW, n_hw), 128))
        n_hw = _cdiv(HW, thw)
    n_b = _cdiv(B, tb)
    needs_mask = (n_hw * thw != HW)

    # Pass 1: streamed spatial reduction + tiny fused FC stack -> s (B, C, 1).
    s = pl.pallas_call(
        functools.partial(_se_reduce_kernel, inv_hw=inv_hw, hw=HW, thw=thw,
                          needs_mask=needs_mask),
        out_shape=jax.ShapeDtypeStruct((B, C, 1), jnp.float32),
        grid=(n_b, n_hw),
        in_specs=[
            pl.BlockSpec((tb, C, thw), lambda b, h: (b, 0, h)),
            pl.BlockSpec((C, ctot), lambda b, h: (0, 0)),       # resident weights
            pl.BlockSpec((ctot, C), lambda b, h: (0, 0)),       # resident weights
        ],
        out_specs=pl.BlockSpec((tb, C, 1), lambda b, h: (b, 0, 0)),
        scratch_shapes=[pltpu.VMEM((tb, C), jnp.float32)],
        compiler_params=pltpu.CompilerParams(
            dimension_semantics=("parallel", "arbitrary"),
            vmem_limit_bytes=vmem_limit),
        cost_estimate=pl.CostEstimate(
            flops=int(B * C * HW + 4 * B * C * ctot),
            transcendentals=int(B * C),
            bytes_accessed=int(B * C * HW * itemsize + 8 * C * ctot + 4 * B * C)),
    )(x3, w_all, wf_t)

    # Pass 2: re-stream x and scale (pure bandwidth-bound, lane-dense stores).
    out3 = pl.pallas_call(
        _se_apply_kernel,
        out_shape=jax.ShapeDtypeStruct((B, C, HW), dtype),
        grid=(n_b, n_hw),
        in_specs=[
            pl.BlockSpec((tb, C, thw), lambda b, h: (b, 0, h)),
            pl.BlockSpec((tb, C, 1), lambda b, h: (b, 0, 0)),
        ],
        out_specs=pl.BlockSpec((tb, C, thw), lambda b, h: (b, 0, h)),
        compiler_params=pltpu.CompilerParams(
            dimension_semantics=("parallel", "parallel"),
            vmem_limit_bytes=vmem_limit),
        cost_estimate=pl.CostEstimate(
            flops=int(B * C * HW),
            transcendentals=0,
            bytes_accessed=int(2 * B * C * HW * itemsize + 4 * B * C)),
    )(x3, s)
    return out3.reshape(B, C, H, W)


def _reference(x, w1, w2, w3, w4, wf):
    # Pure-JAX reference mirroring the PyTorch module.
    y = jnp.mean(x, axis=(2, 3))                                     # (B, C)
    relu = lambda v: jnp.maximum(v, 0.0)
    yc = jnp.concatenate([relu(y @ w1.T), relu(y @ w2.T),
                          relu(y @ w3.T), relu(y @ w4.T)], axis=1)
    s = jax.nn.sigmoid(yc @ wf.T)
    return x * s[:, :, None, None]


if __name__ == "__main__":
    def make_inputs(B, C, H, W, reduction):
        cr = C // reduction
        key = jax.random.PRNGKey(0)
        kx, k1, k2, k3, k4, kf = jax.random.split(key, 6)
        x = jax.random.normal(kx, (B, C, H, W), dtype=jnp.float32)
        # nn.Linear(in, out, bias=False) weight shape is (out, in).
        w1 = jax.random.normal(k1, (cr, C), dtype=jnp.float32) * 0.1
        w2 = jax.random.normal(k2, (cr, C), dtype=jnp.float32) * 0.1
        w3 = jax.random.normal(k3, (cr, C), dtype=jnp.float32) * 0.1
        w4 = jax.random.normal(k4, (cr, C), dtype=jnp.float32) * 0.1
        wf = jax.random.normal(kf, (C, 4 * cr), dtype=jnp.float32) * 0.1
        return x, w1, w2, w3, w4, wf

    def check(out, args):
        out = jax.block_until_ready(out)
        ref = _reference(*args)
        assert out.shape == args[0].shape
        assert jnp.allclose(out, ref, atol=1e-5, rtol=1e-5), "mismatch vs reference"

    # 1) Fused single-pass path (typical SE-block shapes; in_channel=32, r=16).
    args = make_inputs(B=2, C=32, H=16, W=16, reduction=16)
    check(se_layer_v2(*args), args)

    # 2) Forced streaming two-pass path: multi-tile spatial reduction with a
    #    masked ragged last lane tile (HW = 18*18 = 324 -> 3 tiles of 128).
    args = make_inputs(B=2, C=32, H=18, W=18, reduction=16)
    check(se_layer_v2(*args, force_two_pass=True, two_pass_spatial_tile=128), args)

    print("KERNEL_OK")
</pallas_src>

<mosaic_0001>
module attributes {stable_mosaic.version = 11 : i64} {
  func.func @_se_fused_kernel(%arg0: i32, %arg1: memref<2x32x256xf32, #tpu.memory_space<vmem>>, %arg2: memref<32x8xf32, #tpu.memory_space<vmem>>, %arg3: memref<8x32xf32, #tpu.memory_space<vmem>>, %arg4: memref<2x32x256xf32, #tpu.memory_space<vmem>>) attributes {dimension_semantics = [#tpu.dimension_semantics<parallel>], iteration_bounds = array<i64: 1>, scalar_prefetch = 0 : i64, scratch_operands = 0 : i64, tpu.core_type = #tpu.core_type<tc>, window_params = [{transform_indices = @transform_0, window_bounds = array<i64: 2, 32, 256>}, {pipeline_mode = #tpu.pipeline_mode<synchronous>, transform_indices = @transform_1, window_bounds = array<i64: 32, 8>}, {pipeline_mode = #tpu.pipeline_mode<synchronous>, transform_indices = @transform_2, window_bounds = array<i64: 8, 32>}, {transform_indices = @transform_3, window_bounds = array<i64: 2, 32, 256>}]} {
    %c0 = arith.constant 0 : index
    %c0_0 = arith.constant 0 : index
    %c0_1 = arith.constant 0 : index
    %0 = vector.load %arg1[%c0, %c0_0, %c0_1] : memref<2x32x256xf32, #tpu.memory_space<vmem>>, vector<2x32x256xf32>
    %cst = arith.constant dense<0.000000e+00> : vector<2x32xf32>
    %1 = vector.multi_reduction <add>, %0, %cst [2] : vector<2x32x256xf32> to vector<2x32xf32>
    %cst_2 = arith.constant 3.906250e-03 : f32
    %2 = vector.broadcast %cst_2 : f32 to vector<2x32xf32>
    %3 = arith.mulf %1, %2 : vector<2x32xf32>
    %c0_3 = arith.constant 0 : index
    %c0_4 = arith.constant 0 : index
    %4 = vector.load %arg2[%c0_3, %c0_4] : memref<32x8xf32, #tpu.memory_space<vmem>>, vector<32x8xf32>
    %cst_5 = arith.constant dense<0.000000e+00> : vector<2x8xf32>
    %5 = tpu.matmul %3, %4, %cst_5 {dimension_numbers = #tpu.dot_dimension_numbers<[1], [0], [0], [1], [0, 0, 1, 1], [], []>} : vector<2x32xf32>, vector<32x8xf32>, vector<2x8xf32> -> vector<2x8xf32>
    %cst_6 = arith.constant 0.000000e+00 : f32
    %6 = vector.broadcast %cst_6 : f32 to vector<2x8xf32>
    %7 = arith.maximumf %5, %6 : vector<2x8xf32>
    %c0_7 = arith.constant 0 : index
    %c0_8 = arith.constant 0 : index
    %8 = vector.load %arg3[%c0_7, %c0_8] : memref<8x32xf32, #tpu.memory_space<vmem>>, vector<8x32xf32>
    %cst_9 = arith.constant dense<0.000000e+00> : vector<2x32xf32>
    %9 = tpu.matmul %7, %8, %cst_9 {dimension_numbers = #tpu.dot_dimension_numbers<[1], [0], [0], [1], [0, 0, 1, 1], [], []>} : vector<2x8xf32>, vector<8x32xf32>, vector<2x32xf32> -> vector<2x32xf32>
    %10 = arith.negf %9 : vector<2x32xf32>
    %11 = math.exp %10 : vector<2x32xf32>
    %cst_10 = arith.constant 1.000000e+00 : f32
    %12 = vector.broadcast %cst_10 : f32 to vector<2x32xf32>
    %13 = arith.addf %12, %11 : vector<2x32xf32>
    %14 = arith.divf %12, %13 : vector<2x32xf32>
    %15 = vector.shape_cast %14 : vector<2x32xf32> to vector<2x32x1xf32>
    %16 = vector.broadcast %15 : vector<2x32x1xf32> to vector<2x32x256xf32>
    %17 = arith.mulf %0, %16 : vector<2x32x256xf32>
    %c0_11 = arith.constant 0 : index
    %c0_12 = arith.constant 0 : index
    %c0_13 = arith.constant 0 : index
    %18 = vector.load %arg4[%c0_11, %c0_12, %c0_13] : memref<2x32x256xf32, #tpu.memory_space<vmem>>, vector<2x32x256xf32>
    tpu.vector_store %arg4[%c0_11, %c0_12, %c0_13], %17 {strides = array<i32>} : memref<2x32x256xf32, #tpu.memory_space<vmem>>, vector<2x32x256xf32>,
    return
  }
  func.func @transform_0(%arg0: i32) -> (i32, i32, i32) {
    %c0_i32 = arith.constant 0 : i32
    %c0_i32_0 = arith.constant 0 : i32
    %c0_i32_1 = arith.constant 0 : i32
    return %arg0, %c0_i32, %c0_i32_0 : i32, i32, i32
  }
  func.func @transform_1(%arg0: i32) -> (i32, i32) {
    %c0_i32 = arith.constant 0 : i32
    %c0_i32_0 = arith.constant 0 : i32
    %c0_i32_1 = arith.constant 0 : i32
    return %c0_i32, %c0_i32_0 : i32, i32
  }
  func.func @transform_2(%arg0: i32) -> (i32, i32) {
    %c0_i32 = arith.constant 0 : i32
    %c0_i32_0 = arith.constant 0 : i32
    %c0_i32_1 = arith.constant 0 : i32
    return %c0_i32, %c0_i32_0 : i32, i32
  }
  func.func @transform_3(%arg0: i32) -> (i32, i32, i32) {
    %c0_i32 = arith.constant 0 : i32
    %c0_i32_0 = arith.constant 0 : i32
    %c0_i32_1 = arith.constant 0 : i32
    return %arg0, %c0_i32, %c0_i32_0 : i32, i32, i32
  }
}

</mosaic_0001>

<llo_original>
// kernel: se_layer_v2.1
$region0: #{se_layer_v2.1}
  #allocation0 [shape = 'u32[]', space=smem, size = 0x4, offset = 0x4, fixed_abs, tag = 'smem constant byte address 0x4 - core index']
  #allocation1 [shape = 'u32[72,128]{1,0:T(1,128)}', space=vmem, size = 0x9000, scoped, tag = 'internal scratch']
  %s0 = inlined_call_operand.vmem [shape: f32[2,32,256], index: 0, kind: input, shape index: {}]
  %s1 = inlined_call_operand.vmem [shape: f32[32,8], index: 1, kind: input, shape index: {}]
  %s2 = inlined_call_operand.vmem [shape: f32[8,32], index: 2, kind: input, shape index: {}]
  %s3 = inlined_call_operand.vmem [shape: f32[2,32,256], index: 3, kind: output, shape index: {}]
  %s4 = sld [smem:[#allocation0]]
  $region22: #{se_layer_v2.1} parent=0
    _
  %s6 = ssub.s32 1, %s4
  %s7 = scalar_select 0, %s6, %s4
  // Predicated region
  $region2: #{se_layer_v2.1} parent=0 // pred_check
    _
  $region3: #{se_layer_v2.1} parent=0 // pred_check_branch
    %9 = sbr.rel (0) target = $region5
  $region4: #{se_layer_v2.1} parent=0 // pred_region
    _
  $region5: #{se_layer_v2.1} parent=0 // pred_fallthru
    _
  // Predicated region
  $region6: #{se_layer_v2.1} parent=0 // pred_check
    _
  $region7: #{se_layer_v2.1} parent=0 // pred_check_branch
    %11 = sbr.rel (0) target = $region9
  $region8: #{se_layer_v2.1} parent=0 // pred_region
    _
  $region9: #{se_layer_v2.1} parent=0 // pred_fallthru
    _
  // Predicated region
  $region10: #{se_layer_v2.1} parent=0 // pred_check
    _
  $region11: #{se_layer_v2.1} parent=0 // pred_check_branch
    %13 = sbr.rel (0) target = $region13
  $region12: #{se_layer_v2.1} parent=0 // pred_region
    _
  $region13: #{se_layer_v2.1} parent=0 // pred_fallthru
    _
  %v14 = vld [vmem:[%s0] sm:$0xff]
  %v15 = vld [vmem:[%s0 + $0x8] sm:$0xff]
  %v16 = vld [vmem:[%s0 + $0x10] sm:$0xff]
  %v17 = vld [vmem:[%s0 + $0x18] sm:$0xff]
  %v18 = vld [vmem:[%s0 + $0x20] sm:$0xff]
  %v19 = vld [vmem:[%s0 + $0x28] sm:$0xff]
  %v20 = vld [vmem:[%s0 + $0x30] sm:$0xff]
  %v21 = vld [vmem:[%s0 + $0x38] sm:$0xff]
  %v22 = vld [vmem:[%s0 + $0x40] sm:$0xff]
  %v23 = vld [vmem:[%s0 + $0x48] sm:$0xff]
  %v24 = vld [vmem:[%s0 + $0x50] sm:$0xff]
  %v25 = vld [vmem:[%s0 + $0x58] sm:$0xff]
  %v26 = vld [vmem:[%s0 + $0x60] sm:$0xff]
  %v27 = vld [vmem:[%s0 + $0x68] sm:$0xff]
  %v28 = vld [vmem:[%s0 + $0x70] sm:$0xff]
  %v29 = vld [vmem:[%s0 + $0x78] sm:$0xff]
  %v30 = vadd.f32 %v14, %v15
  %31 = vadd.xlane.f32.xlu0 %v30
  %v32 = vpop.xlane.xlu0 %31
  %v33 = vadd.f32 %v16, %v17
  %34 = vadd.xlane.f32.xlu0 %v33
  %v35 = vpop.xlane.xlu0 %34
  %v36 = vadd.f32 %v18, %v19
  %37 = vadd.xlane.f32.xlu0 %v36
  %v38 = vpop.xlane.xlu0 %37
  %v39 = vadd.f32 %v20, %v21
  %40 = vadd.xlane.f32.xlu0 %v39
  %v41 = vpop.xlane.xlu0 %40
  %v42 = vadd.f32 %v22, %v23
  %43 = vadd.xlane.f32.xlu0 %v42
  %v44 = vpop.xlane.xlu0 %43
  %v45 = vadd.f32 %v24, %v25
  %46 = vadd.xlane.f32.xlu0 %v45
  %v47 = vpop.xlane.xlu0 %46
  %v48 = vadd.f32 %v26, %v27
  %49 = vadd.xlane.f32.xlu0 %v48
  %v50 = vpop.xlane.xlu0 %49
  %v51 = vadd.f32 %v28, %v29
  %52 = vadd.xlane.f32.xlu0 %v51
  %v53 = vpop.xlane.xlu0 %52
  %v54 = vmul.f32 %v32, 0.00390625
  %v55 = vmul.f32 %v35, 0.00390625
  %v56 = vmul.f32 %v38, 0.00390625
  %v57 = vmul.f32 %v41, 0.00390625
  %v58 = vmul.f32 %v44, 0.00390625
  %v59 = vmul.f32 %v47, 0.00390625
  %v60 = vmul.f32 %v50, 0.00390625
  %v61 = vmul.f32 %v53, 0.00390625
  %v62 = vld [vmem:[%s1] sm:$0xff]
  %v63 = vld [vmem:[%s1 + $0x8] sm:$0xff]
  %v64 = vld [vmem:[%s1 + $0x10] sm:$0xff]
  %v65 = vld [vmem:[%s1 + $0x18] sm:$0xff]
  %v74 = vlaneseq
  %v75 = vand.u32 %v74, 127
  %v76 = vperm.slane %v54, %v75
  %v77 = vadd.s32 %v75, 4294967288
  %v78 = vperm.slane %v55, %v77
  %vm79 = vcmask 130112
  %v80 = vsel %vm79, %v78, %v76
  %v81 = vadd.s32 %v75, 4294967280
  %v82 = vperm.slane %v56, %v81
  %vm83 = vcmask 195712
  %v84 = vsel %vm83, %v82, %v80
  %v85 = vadd.s32 %v75, 4294967272
  %v86 = vperm.slane %v57, %v85
  %vm87 = vcmask 261312
  %v88 = vsel %vm87, %v86, %v84
  %v89 = vperm.slane %v58, %v75
  %v90 = vperm.slane %v59, %v77
  %v91 = vsel %vm79, %v90, %v89
  %v92 = vperm.slane %v60, %v81
  %v93 = vsel %vm83, %v92, %v91
  %v94 = vperm.slane %v61, %v85
  %v95 = vsel %vm87, %v94, %v93
  %vm96 = vcmask 1041409
  %v97 = vsel %vm96, %v95, %v88
  %vm98 = vcmask 261120
  %v99 = vsel %vm98, %v97, 0
  %101 = vmatpush.msra.mxu0 0.0
  %102 = vmatpush.msra.mxu0 0.0
  %103 = vmatpush.msra.mxu0 0.0
  %104 = vmatpush.msra.mxu0 0.0
  %105 = vmatpush.msra.mxu0 0.0
  %106 = vmatpush.msra.mxu0 0.0
  %107 = vmatpush.msra.mxu0 0.0
  %108 = vmatpush.msra.mxu0 0.0
  %109 = vmatpush.msra.mxu0 0.0
  %110 = vmatpush.msra.mxu0 0.0
  %111 = vmatpush.msra.mxu0 0.0
  %112 = vmatpush.msra.mxu0 0.0
  %113 = vmatpush.msra.mxu0 %v65
  %114 = vmatpush.msra.mxu0 %v64
  %115 = vmatpush.msra.mxu0 %v63
  %116 = vmatpush.msra.mxu0 %v62
  %117 = vmatmul.f32.gmra.mxu0 %v99
  %v118 = vpop.f32.mrf.mxu0
  %v119 = vadd.f32 0.0, %v118
  %120 = vdwg.mxu0
  %v121 = vmax.f32 %v119, 0.0
  %v122 = vld [vmem:[%s2] sm:$0xff]
  %vm123 = vcmask 64512
  %v125 = vsel %vm123, %v121, 0
  %127 = vmatpush.msra.mxu0 0.0
  %128 = vmatpush.msra.mxu0 0.0
  %129 = vmatpush.msra.mxu0 0.0
  %130 = vmatpush.msra.mxu0 0.0
  %131 = vmatpush.msra.mxu0 0.0
  %132 = vmatpush.msra.mxu0 0.0
  %133 = vmatpush.msra.mxu0 0.0
  %134 = vmatpush.msra.mxu0 0.0
  %135 = vmatpush.msra.mxu0 0.0
  %136 = vmatpush.msra.mxu0 0.0
  %137 = vmatpush.msra.mxu0 0.0
  %138 = vmatpush.msra.mxu0 0.0
  %139 = vmatpush.msra.mxu0 0.0
  %140 = vmatpush.msra.mxu0 0.0
  %141 = vmatpush.msra.mxu0 0.0
  %142 = vmatpush.msra.mxu0 %v122
  %143 = vmatmul.f32.gmra.mxu0 %v125
  %v144 = vpop.f32.mrf.mxu0
  %v145 = vadd.f32 0.0, %v144
  %146 = vdwg.mxu0
  %v147 = vxor.u32 %v145, 2147483648
  %v148 = vmul.f32 %v147, 1.442695
  %v149 = vpow.pop %v148
  %v150 = vadd.f32 %v149, 1.0
  %v151 = vrcp.pop %v150
  %v152 = vmul.f32 %v150, %v151
  %v153 = vsub.f32 1.0, %v152
  %v154 = vmul.f32 %v151, %v153
  %v155 = vadd.f32 %v151, %v154
  %vm156 = vweird.f32 %v150
  %vm157 = vweird.f32 %v151
  %vm158 = vmor %vm156, %vm157
  %v159 = vsel %vm158, %v151, %v155
  %v160 = vand.u32 2147483647, %v150
  %vm161 = vcmp.eq.f32.partialorder %v160, 8.507059e+37
  %v162 = vand.u32 %v150, 2147483648
  %v163 = vor.u32 1.1754944e-38, %v162
  %v164 = vsel %vm161, %v163, %v159
  %v165 = vmul.f32 1.0, %v164
  %v166 = vperm.slane %v165, 0
  %v167 = vlaneseq
  %v168 = vshrl.u32 %v167, 7
  %170 = vset.pattern.permute.xlu0 %v168
  %171 = vperm.xlu0 %170, %v166
  %v172 = vpop.permute.xlu0 %171
  %v173 = vlaneseq
  %v174 = vshrl.u32 %v173, 7
  %v175 = vadd.s32 %v174, 8
  %176 = vset.pattern.permute.xlu0 %v175
  %177 = vperm.xlu0 %176, %v166
  %v178 = vpop.permute.xlu0 %177
  %v179 = vlaneseq
  %v180 = vshrl.u32 %v179, 7
  %v181 = vadd.s32 %v180, 16
  %182 = vset.pattern.permute.xlu0 %v181
  %183 = vperm.xlu0 %182, %v166
  %v184 = vpop.permute.xlu0 %183
  %v185 = vlaneseq
  %v186 = vshrl.u32 %v185, 7
  %v187 = vadd.s32 %v186, 24
  %188 = vset.pattern.permute.xlu0 %v187
  %189 = vperm.xlu0 %188, %v166
  %v190 = vpop.permute.xlu0 %189
  %v191 = vperm.slane %v165, 1
  %v192 = vlaneseq
  %v193 = vshrl.u32 %v192, 7
  %195 = vset.pattern.permute.xlu0 %v193
  %196 = vperm.xlu0 %195, %v191
  %v197 = vpop.permute.xlu0 %196
  %v198 = vlaneseq
  %v199 = vshrl.u32 %v198, 7
  %v200 = vadd.s32 %v199, 8
  %201 = vset.pattern.permute.xlu0 %v200
  %202 = vperm.xlu0 %201, %v191
  %v203 = vpop.permute.xlu0 %202
  %v204 = vlaneseq
  %v205 = vshrl.u32 %v204, 7
  %v206 = vadd.s32 %v205, 16
  %207 = vset.pattern.permute.xlu0 %v206
  %208 = vperm.xlu0 %207, %v191
  %v209 = vpop.permute.xlu0 %208
  %v210 = vlaneseq
  %v211 = vshrl.u32 %v210, 7
  %v212 = vadd.s32 %v211, 24
  %213 = vset.pattern.permute.xlu0 %v212
  %214 = vperm.xlu0 %213, %v191
  %v215 = vpop.permute.xlu0 %214
  %v216 = vmul.f32 %v14, %v172
  %v217 = vmul.f32 %v15, %v172
  %v218 = vmul.f32 %v16, %v178
  %v219 = vmul.f32 %v17, %v178
  %v220 = vmul.f32 %v18, %v184
  %v221 = vmul.f32 %v19, %v184
  %v222 = vmul.f32 %v20, %v190
  %v223 = vmul.f32 %v21, %v190
  %v224 = vmul.f32 %v22, %v197
  %v225 = vmul.f32 %v23, %v197
  %v226 = vmul.f32 %v24, %v203
  %v227 = vmul.f32 %v25, %v203
  %v228 = vmul.f32 %v26, %v209
  %v229 = vmul.f32 %v27, %v209
  %v230 = vmul.f32 %v28, %v215
  %v231 = vmul.f32 %v29, %v215
  %232 = vst [vmem:[%s3] sm:$0xff] %v216
  %233 = vst [vmem:[%s3 + $0x8] sm:$0xff] %v217
  %234 = vst [vmem:[%s3 + $0x10] sm:$0xff] %v218
  %235 = vst [vmem:[%s3 + $0x18] sm:$0xff] %v219
  %236 = vst [vmem:[%s3 + $0x20] sm:$0xff] %v220
  %237 = vst [vmem:[%s3 + $0x28] sm:$0xff] %v221
  %238 = vst [vmem:[%s3 + $0x30] sm:$0xff] %v222
  %239 = vst [vmem:[%s3 + $0x38] sm:$0xff] %v223
  %240 = vst [vmem:[%s3 + $0x40] sm:$0xff] %v224
  %241 = vst [vmem:[%s3 + $0x48] sm:$0xff] %v225
  %242 = vst [vmem:[%s3 + $0x50] sm:$0xff] %v226
  %243 = vst [vmem:[%s3 + $0x58] sm:$0xff] %v227
  %244 = vst [vmem:[%s3 + $0x60] sm:$0xff] %v228
  %245 = vst [vmem:[%s3 + $0x68] sm:$0xff] %v229
  %246 = vst [vmem:[%s3 + $0x70] sm:$0xff] %v230
  %247 = vst [vmem:[%s3 + $0x78] sm:$0xff] %v231
  // Predicated region
  $region14: #{se_layer_v2.1} parent=0 // pred_check
    _
  $region15: #{se_layer_v2.1} parent=0 // pred_check_branch
    %249 = sbr.rel (0) target = $region17
  $region16: #{se_layer_v2.1} parent=0 // pred_region
    _
  $region17: #{se_layer_v2.1} parent=0 // pred_fallthru
    _
  // Predicated region
  $region18: #{se_layer_v2.1} parent=0 // pred_check
    _
  $region19: #{se_layer_v2.1} parent=0 // pred_check_branch
    %251 = sbr.rel (0) target = $region21
  $region20: #{se_layer_v2.1} parent=0 // pred_region
    _
  $region21: #{se_layer_v2.1} parent=0 // pred_fallthru
    _

</llo_original>
